<compile_context>
chip_gen: v5e
topology: v5e:2x2
jax: 0.10.0
libtpu: 0.0.40
codegen_flags: <defaults>
</compile_context>

<pallas_src>
import functools

import jax
import jax.numpy as jnp
from jax.experimental import pallas as pl
from jax.experimental.pallas import tpu as pltpu


def _round_up(x, m):
    return ((x + m - 1) // m) * m


# -----------------------------------------------------------------------------
# Scalar (single-observation) update kernel: pure SMEM scalar math, state is
# updated in place through input/output aliasing.
# -----------------------------------------------------------------------------
def _scalar_update_kernel(x_ref, total_ref, count_ref,
                          new_total_ref, new_count_ref):
    # All refs are (1,) float32 in SMEM.  total/count alias their outputs, so
    # read the inputs into locals FIRST, then write (avoids a RAW hazard under
    # input_output_aliases).
    x = x_ref[0]
    t = total_ref[0]
    c = count_ref[0]
    # Adding x unconditionally is exact: x == 0.0 (or -0.0) contributes nothing
    # to the sum, which is precisely the PyTorch `if not scalar.eq(0.0)` skip.
    new_total_ref[0] = t + x
    new_count_ref[0] = c + (x != 0.0).astype(jnp.float32)


@functools.partial(jax.jit, donate_argnums=(1, 2))
def _scalar_update(scalar, total, count):
    smem = pl.BlockSpec(memory_space=pltpu.SMEM)
    return pl.pallas_call(
        _scalar_update_kernel,
        out_shape=(jax.ShapeDtypeStruct((1,), jnp.float32),   # new total
                   jax.ShapeDtypeStruct((1,), jnp.float32)),  # new count
        in_specs=[smem, smem, smem],
        out_specs=(smem, smem),
        # total -> new_total, count -> new_count updated in place (P8 pattern).
        input_output_aliases={1: 0, 2: 1},
    )(scalar, total, count)


# -----------------------------------------------------------------------------
# Batched update kernel: fold N observations in one launch.  Pure HBM-bandwidth
# streaming; steady-state loop is VPU-only adds into an (8,128) accumulator.
# -----------------------------------------------------------------------------
def _batched_update_kernel(x_ref, tot_ref, cnt_ref, *,
                           rows, block_rows, steps_per_split):
    c = pl.program_id(0)          # split index ("parallel"; TC shard on v7x)
    i = pl.program_id(1)          # step within the split ("arbitrary")

    @pl.when(i == 0)
    def _init():
        tot_ref[...] = jnp.zeros_like(tot_ref)
        cnt_ref[...] = jnp.zeros_like(cnt_ref)

    # Logical (unclamped) block index.  The DMA index_map clamps it, so steps
    # past the end of the stream re-read the last real block; they are fully
    # masked out below (valid_rows <= 0).
    block_idx = c * steps_per_split + i
    valid_rows = rows - block_idx * block_rows    # may be <= 0 or > block_rows

    x = x_ref[...]                                # (block_rows, 128) f32

    def _accumulate(xv, nzv):
        # Fold the tile's (block_rows//8) vregs into one (8,128) accumulator
        # with elementwise VPU adds only; the cross-lane reduce of the partials
        # happens once in the wrapper, not per grid step.
        x3 = xv.reshape(block_rows // 8, 8, 128)
        n3 = nzv.reshape(block_rows // 8, 8, 128)
        tot_ref[...] += jnp.sum(x3, axis=0)[None]
        cnt_ref[...] += jnp.sum(n3, axis=0)[None]

    @pl.when(valid_rows >= block_rows)            # fully in-range: fast path
    def _full():
        _accumulate(x, (x != 0.0).astype(jnp.float32))

    @pl.when(valid_rows < block_rows)             # tail / overhang: mask rows
    def _tail():
        row = jax.lax.broadcasted_iota(jnp.int32, (block_rows, 128), 0)
        keep = row < valid_rows
        xm = jnp.where(keep, x, 0.0)              # OOB rows may be garbage/NaN
        nzm = (keep & (x != 0.0)).astype(jnp.float32)
        _accumulate(xm, nzm)


@functools.partial(jax.jit, static_argnames=("block_rows", "num_splits"))
def _batched_update(total, count, x2d, *, block_rows, num_splits):
    rows = x2d.shape[0]
    blocks_total = pl.cdiv(rows, block_rows)
    steps_per_split = pl.cdiv(blocks_total, num_splits)

    kernel = functools.partial(_batched_update_kernel, rows=rows,
                               block_rows=block_rows,
                               steps_per_split=steps_per_split)

    def x_map(c, i):
        # Clamp so the DMA never addresses a block past the array; duplicate
        # reads are masked out in-kernel via the unclamped logical index.
        return (jnp.minimum(c * steps_per_split + i, blocks_total - 1), 0)

    acc_spec = pl.BlockSpec((1, 8, 128), lambda c, i: (c, 0, 0))

    part_t, part_c = pl.pallas_call(
        kernel,
        out_shape=(jax.ShapeDtypeStruct((num_splits, 8, 128), jnp.float32),
                   jax.ShapeDtypeStruct((num_splits, 8, 128), jnp.float32)),
        grid=(num_splits, steps_per_split),
        in_specs=[pl.BlockSpec((block_rows, 128), x_map)],
        out_specs=(acc_spec, acc_spec),
        compiler_params=pltpu.CompilerParams(
            dimension_semantics=("parallel", "arbitrary")),
    )(x2d)

    new_total = total + jnp.sum(part_t).reshape(total.shape)
    new_count = count + jnp.sum(part_c).reshape(count.shape)
    return new_total, new_count


class Scalar:
    """JAX/Pallas port of the PyTorch `Scalar` running-mean metric.

    NOTE: count is float32 — after 2**24 nonzero observations `count + 1 ==
    count` and the mean silently freezes (matches the PyTorch float buffer).
    """

    def __init__(self):
        # Matches register_buffer(FloatTensor([0.0])).
        self.total = jnp.zeros((1,), jnp.float32)
        self.count = jnp.zeros((1,), jnp.float32)

    def __call__(self, scalar):
        scalar = jnp.asarray(scalar, jnp.float32).reshape((1,))
        self.total, self.count = _scalar_update(scalar, self.total, self.count)
        return self.value   # total / count; NaN while count == 0 (torch 0/0)

    def update_batch(self, values, block_rows=2048, num_splits=1):
        """Fold a whole stream of observations with one kernel launch.

        Zero observations are skipped (identical to calling forward per
        element), so zero-padding to a tile boundary is semantics-preserving.
        Set num_splits=2 on v7x to shard the reduction over both TensorCores.
        block_rows=2048 is a 1 MiB f32 tile (2 MiB double-buffered); anything
        up to ~8192 fits the default scoped-VMEM budget on all generations.
        """
        vals = jnp.asarray(values, jnp.float32).reshape(-1)
        n = vals.shape[0]
        if n == 0:
            return self.value

        rem = n % 1024
        if rem:
            # Pad only to the next (8,128)-tile boundary (< 1024 elements).
            # TODO(synk): handle the ragged last tile in-kernel (manual DMA)
            # to make this fully copy-free for arbitrary n.
            vals = jnp.pad(vals, (0, 1024 - rem))
        x2d = vals.reshape(-1, 128)            # free reshape when no pad needed
        rows = x2d.shape[0]                    # multiple of 8

        br = max(8, _round_up(int(block_rows), 8))
        br = min(br, rows)                     # don't tile past the data
        ns = max(1, int(num_splits))

        self.total, self.count = _batched_update(
            self.total, self.count, x2d, block_rows=br, num_splits=ns)
        return self.value

    @property
    def value(self):
        # Lazy: only divide when the caller actually reads the metric.
        return self.total / self.count


if __name__ == "__main__":
    key = jax.random.PRNGKey(0)
    k1, k2, k3 = jax.random.split(key, 3)

    # ---- scalar (per-step) path ------------------------------------------
    x1 = jax.random.normal(k1, (1,), dtype=jnp.float32)   # nonzero w.p. 1
    x2 = jnp.zeros((1,), jnp.float32)                     # zero -> skipped
    x3 = jnp.asarray([3.0], jnp.float32)

    metric = Scalar()
    v1 = metric(x1)   # mean of {x1}
    v2 = metric(x2)   # zero ignored -> still mean of {x1}
    v3 = metric(x3)   # mean of {x1, 3.0}
    jax.block_until_ready((v1, v2, v3))

    ref_total = float(x1[0]) + 3.0
    ref_count = 2.0
    assert jnp.allclose(v1[0], x1[0], rtol=1e-6)
    assert jnp.allclose(v2[0], x1[0], rtol=1e-6)
    assert jnp.allclose(v3[0], ref_total / ref_count, rtol=1e-6)
    assert jnp.allclose(metric.total[0], ref_total, rtol=1e-6)
    assert jnp.allclose(metric.count[0], ref_count, rtol=1e-6)

    # ---- batched path: ragged length, ~half zeroed out ---------------------
    n = 2085                                       # not a multiple of 128/1024
    vals = jax.random.normal(k2, (n,), dtype=jnp.float32)
    keep = jax.random.bernoulli(k3, 0.5, (n,)).astype(jnp.float32)
    vals = vals * keep
    ref_t = jnp.sum(vals)
    ref_c = jnp.sum((vals != 0.0).astype(jnp.float32))

    # small tiles -> multi-step grid of full blocks
    m1 = Scalar()
    o1 = m1.update_batch(vals, block_rows=8, num_splits=1)
    jax.block_until_ready(o1)
    assert jnp.allclose(m1.total[0], ref_t, rtol=1e-5, atol=1e-4)
    assert jnp.allclose(m1.count[0], ref_c, rtol=1e-6)
    assert jnp.allclose(o1[0], ref_t / ref_c, rtol=1e-5, atol=1e-4)

    # tile that overhangs the data -> exercises the in-kernel row mask
    m2 = Scalar()
    o2 = m2.update_batch(vals, block_rows=16, num_splits=1)
    jax.block_until_ready(o2)
    assert jnp.allclose(m2.total[0], ref_t, rtol=1e-5, atol=1e-4)
    assert jnp.allclose(m2.count[0], ref_c, rtol=1e-6)

    # two-way split (v7x dual-TensorCore layout) -> per-split partial blocks,
    # includes a clamped/empty trailing step on the second split
    m3 = Scalar()
    o3 = m3.update_batch(vals, block_rows=8, num_splits=2)
    jax.block_until_ready(o3)
    assert jnp.allclose(m3.total[0], ref_t, rtol=1e-5, atol=1e-4)
    assert jnp.allclose(m3.count[0], ref_c, rtol=1e-6)

    # default (large-tile) path: block_rows clamps to the data, single step
    m4 = Scalar()
    o4 = m4.update_batch(vals)
    jax.block_until_ready(o4)
    assert jnp.allclose(m4.total[0], ref_t, rtol=1e-5, atol=1e-4)
    assert jnp.allclose(m4.count[0], ref_c, rtol=1e-6)

    print("KERNEL_OK")
</pallas_src>

<mosaic_0001>
module attributes {stable_mosaic.version = 11 : i64} {
  func.func @_scalar_update_kernel(%arg0: memref<1xf32, #tpu.memory_space<smem>>, %arg1: memref<1xf32, #tpu.memory_space<smem>>, %arg2: memref<1xf32, #tpu.memory_space<smem>>, %arg3: memref<1xf32, #tpu.memory_space<smem>>, %arg4: memref<1xf32, #tpu.memory_space<smem>>) attributes {dimension_semantics = [], scalar_prefetch = 0 : i64, scratch_operands = 0 : i64, tpu.core_type = #tpu.core_type<tc>} {
    %c0 = arith.constant 0 : index
    %0 = memref.load %arg0[%c0] : memref<1xf32, #tpu.memory_space<smem>>
    %c0_0 = arith.constant 0 : index
    %1 = memref.load %arg1[%c0_0] : memref<1xf32, #tpu.memory_space<smem>>
    %c0_1 = arith.constant 0 : index
    %2 = memref.load %arg2[%c0_1] : memref<1xf32, #tpu.memory_space<smem>>
    %3 = arith.addf %1, %0 : f32
    %c0_2 = arith.constant 0 : index
    %4 = memref.load %arg3[%c0_2] : memref<1xf32, #tpu.memory_space<smem>>
    memref.store %3, %arg3[%c0_2] : memref<1xf32, #tpu.memory_space<smem>>
    %cst = arith.constant 0.000000e+00 : f32
    %5 = arith.cmpf one, %0, %cst : f32
    %6 = arith.extui %5 : i1 to i32
    %7 = arith.sitofp %6 : i32 to f32
    %8 = arith.addf %2, %7 : f32
    %c0_3 = arith.constant 0 : index
    %9 = memref.load %arg4[%c0_3] : memref<1xf32, #tpu.memory_space<smem>>
    memref.store %8, %arg4[%c0_3] : memref<1xf32, #tpu.memory_space<smem>>
    return
  }
}

</mosaic_0001>

<llo_original>
// kernel: _scalar_update.1
$region0: #{_scalar_update.1}
  #allocation0 [shape = 'u32[]', space=smem, size = 0x4, offset = 0x4, fixed_abs, tag = 'smem constant byte address 0x4 - core index']
  #allocation1 [shape = 'u32[72,128]{1,0:T(1,128)}', space=vmem, size = 0x9000, scoped, tag = 'internal scratch']
  #allocation2 [shape = 'f32[1]{0:T(128)S(6)}', space=smem, size = 0x200, scoped, tag = 'scoped memory for _scalar_update.1']
  #allocation3 [shape = 'f32[1]{0:T(128)S(6)}', space=smem, size = 0x200, scoped, tag = 'scoped memory for _scalar_update.1']
  #allocation4 [shape = 'f32[1]{0:T(128)S(6)}', space=smem, size = 0x200, scoped, tag = 'scoped memory for _scalar_update.1']
  %s0 = inlined_call_operand.<no memory space> [shape: f32[1], index: 0, kind: input, shape index: {}]
  %s1 = inlined_call_operand.<no memory space> [shape: f32[1], index: 1, kind: input, shape index: {}, may-alias: {1,3}]
  %s2 = inlined_call_operand.<no memory space> [shape: f32[1], index: 2, kind: input, shape index: {}, may-alias: {2,4}]
  %s3 = inlined_call_operand.hbm [shape: f32[1], index: 3, kind: output, shape index: {0}, may-alias: {1,3}]
  %s4 = inlined_call_operand.hbm [shape: f32[1], index: 4, kind: output, shape index: {1}, may-alias: {2,4}]
  %5 = xla_tuple %s3, %s4
  %s6 = sld [smem:[#allocation0]]
  $region30: #{_scalar_update.1} parent=0
    _
  %s8 = ssub.s32 1, %s6
  %s9 = scalar_select 0, %s8, %s6
  %10 = sst [smem:[#allocation2]] %s0
  %11 = sst [smem:[#allocation3]] %s1
  %12 = sst [smem:[#allocation4]] %s2
  $region1: #{_scalar_update.1} parent=0
    #allocation5 [shape = 'u8[512]{0}', space=smem, size = 0x200, scoped, tag = 'output window, operand 0, single buffered']
    #allocation6 [shape = 's32[1]{0}', space=sflag, size = 0x4, scoped, tag = 'scoped memory for _scalar_update.1']
    #allocation7 [shape = 'u8[512]{0}', space=smem, size = 0x200, scoped, tag = 'output window, operand 1, single buffered']
    #allocation8 [shape = 's32[1]{0}', space=sflag, size = 0x4, scoped, tag = 'scoped memory for _scalar_update.1']
    %13 = vsyncpa [#allocation6], 0
    %14 = vsyncpa [#allocation8], 0
    // Predicated region
    $region2: #{_scalar_update.1} parent=1 // pred_check
      _
    $region3: #{_scalar_update.1} parent=1 // pred_check_branch
      %16 = sbr.rel (0) target = $region5
    $region4: #{_scalar_update.1} parent=1 // pred_region
      _
    $region5: #{_scalar_update.1} parent=1 // pred_fallthru
      _
    // Predicated region
    $region6: #{_scalar_update.1} parent=1 // pred_check
      _
    $region7: #{_scalar_update.1} parent=1 // pred_check_branch
      %18 = sbr.rel (0) target = $region9
    $region8: #{_scalar_update.1} parent=1 // pred_region
      _
    $region9: #{_scalar_update.1} parent=1 // pred_fallthru
      _
    // Predicated region
    $region10: #{_scalar_update.1} parent=1 // pred_check
      _
    $region11: #{_scalar_update.1} parent=1 // pred_check_branch
      %20 = sbr.rel (0) target = $region13
    $region12: #{_scalar_update.1} parent=1 // pred_region
      _
    $region13: #{_scalar_update.1} parent=1 // pred_fallthru
      _
    %s21 = sld [smem:[#allocation2]]
    %s22 = sld [smem:[#allocation3]]
    %s23 = sld [smem:[#allocation4]]
    %s24 = sadd.f32 %s22, %s21
    %s25 = scalar_lea.smem [#allocation5], 0
    %26 = sst [smem:[%s25]] %s24
    %p27 = scmp.ne.f32.partialorder %s21, 0.0
    %s28 = scalar_select %p27, 1, 0
    %s29 = scvt.s32.f32 %s28
    %s30 = sadd.f32 %s23, %s29
    %s31 = scalar_lea.smem [#allocation7], 0
    %32 = sst [smem:[%s31]] %s30
    // Predicated region
    $region14: #{_scalar_update.1} parent=1 // pred_check
      _
    $region15: #{_scalar_update.1} parent=1 // pred_check_branch
      %34 = sbr.rel (0) target = $region17
    $region16: #{_scalar_update.1} parent=1 // pred_region
      %36 = vsyncadd [#allocation6], 0
      %s38 = sshll.u32 %s3, 4
      %s39 = int_to_ptr.hbm [resolvable:$true] %s38
      %41 = dma.smem_to_hbm [#allocation5], 16, %s39, [#allocation6]
    $region17: #{_scalar_update.1} parent=1 // pred_fallthru
      _
    // Predicated region
    $region18: #{_scalar_update.1} parent=1 // pred_check
      _
    $region19: #{_scalar_update.1} parent=1 // pred_check_branch
      %43 = sbr.rel (0) target = $region21
    $region20: #{_scalar_update.1} parent=1 // pred_region
      %45 = vsyncadd [#allocation8], 0
      %s47 = sshll.u32 %s4, 4
      %s48 = int_to_ptr.hbm [resolvable:$true] %s47
      %50 = dma.smem_to_hbm [#allocation7], 16, %s48, [#allocation8]
    $region21: #{_scalar_update.1} parent=1 // pred_fallthru
      _
    // Predicated region
    $region22: #{_scalar_update.1} parent=1 // pred_check
      _
    $region23: #{_scalar_update.1} parent=1 // pred_check_branch
      %52 = sbr.rel (0) target = $region25
    $region24: #{_scalar_update.1} parent=1 // pred_region
      %54 = dma.done [#allocation6], 16
    $region25: #{_scalar_update.1} parent=1 // pred_fallthru
      _
    // Predicated region
    $region26: #{_scalar_update.1} parent=1 // pred_check
      _
    $region27: #{_scalar_update.1} parent=1 // pred_check_branch
      %56 = sbr.rel (0) target = $region29
    $region28: #{_scalar_update.1} parent=1 // pred_region
      %58 = dma.done [#allocation8], 16
    $region29: #{_scalar_update.1} parent=1 // pred_fallthru
      _
    %59 = sfence
    %60 = vsyncpa [#allocation6], 1
    %61 = vsyncpa [#allocation8], 1

</llo_original>
